<compile_context>
chip_gen: v6e
topology: v6e:2x2x1
jax: 0.10.0
libtpu: 0.0.40
codegen_flags: <defaults>
</compile_context>

<pallas_src>
import math

import jax
import jax.numpy as jnp
from jax.experimental import pallas as pl
from jax.experimental.pallas import tpu as pltpu


# ----------------------------------------------------------------------------
# PoincareBall manifold ops (parameter-setup glue, plain JAX).
# ----------------------------------------------------------------------------
_MIN_NORM = 1e-15
_EPS_F32 = 4e-3


def poincare_proj_tan0(u, c):
    return u


def poincare_expmap0(u, c):
    sqrt_c = jnp.sqrt(c)
    u_norm = jnp.maximum(jnp.linalg.norm(u, axis=-1, keepdims=True), _MIN_NORM)
    return jnp.tanh(sqrt_c * u_norm) * u / (sqrt_c * u_norm)


def poincare_proj(x, c):
    sqrt_c = jnp.sqrt(c)
    norm = jnp.maximum(jnp.linalg.norm(x, axis=-1, keepdims=True), _MIN_NORM)
    maxnorm = (1.0 - _EPS_F32) / sqrt_c
    clipped = x / norm * maxnorm
    return jnp.where(norm > maxnorm, clipped, x)


def make_hyp_bias(raw_bias, c):
    """raw_bias: (3H,) -> hyperbolic bias (1, 3H), as in RNNCellBase_with_hyp_bias."""
    b = raw_bias.reshape(1, -1)
    b = poincare_proj_tan0(b, c)
    b = poincare_expmap0(b, c)
    b = poincare_proj(b, c)
    return b


# ----------------------------------------------------------------------------
# One-time parameter packing (do NOT call per step).
# ----------------------------------------------------------------------------
def _round_up(x, m):
    return (x + m - 1) // m * m


def prepare_gru_params(weight_ih, weight_hh, bias_ih, bias_hh, *, lane=128):
    """Pack parameters for the Pallas kernel.

    weight_ih: (3H, I), weight_hh: (3H, H), bias_ih/bias_hh: (1, 3H) or (3H,).
    Returns dict with lane-padded, pre-transposed weights and folded biases.
    Gate order along the 3H axis is [r, z, n] (torch._VF.gru_cell).
    """
    H3, I = weight_ih.shape
    H = H3 // 3
    Ip = _round_up(I, lane)
    Hp = _round_up(H, lane)
    dtype = weight_ih.dtype

    # Transposed, per-gate lane-padded weights: (Ip, 3*Hp) / (Hp, 3*Hp).
    wih_t = jnp.zeros((Ip, 3 * Hp), dtype)
    whh_t = jnp.zeros((Hp, 3 * Hp), dtype)
    for g in range(3):
        wih_t = wih_t.at[:I, g * Hp:g * Hp + H].set(weight_ih[g * H:(g + 1) * H, :].T)
        whh_t = whh_t.at[:H, g * Hp:g * Hp + H].set(weight_hh[g * H:(g + 1) * H, :].T)

    bih = bias_ih.reshape(-1)
    bhh = bias_hh.reshape(-1)
    # r/z biases fold into one combined bias; n-gate keeps b_in and b_hn apart
    # (b_hn must be added to h_n before the r * h_n product).
    b_rz = jnp.zeros((1, 2 * Hp), dtype)
    b_rz = b_rz.at[0, 0:H].set(bih[0:H] + bhh[0:H])
    b_rz = b_rz.at[0, Hp:Hp + H].set(bih[H:2 * H] + bhh[H:2 * H])
    b_in = jnp.zeros((1, Hp), dtype).at[0, :H].set(bih[2 * H:3 * H])
    b_hn = jnp.zeros((1, Hp), dtype).at[0, :H].set(bhh[2 * H:3 * H])

    return dict(wih_t=wih_t, whh_t=whh_t, b_rz=b_rz, b_in=b_in, b_hn=b_hn,
                I=I, H=H, Ip=Ip, Hp=Hp)


# ----------------------------------------------------------------------------
# Pallas kernel: GRU cell forward (torch._VF.gru_cell semantics).
# ----------------------------------------------------------------------------
def _gru_cell_kernel(x_ref, h_ref, wih_t_ref, whh_t_ref,
                     brz_ref, bin_ref, bhn_ref, out_ref):
    Hp = h_ref.shape[-1]
    x = x_ref[...]                       # (TB, Ip) — native dtype, MXU casts
    h = h_ref[...]                       # (TB, Hp)

    # Two MXU matmuls with f32 accumulation; weights are VMEM-resident blocks.
    gi = jnp.dot(x, wih_t_ref[...], preferred_element_type=jnp.float32)  # (TB, 3Hp)
    gh = jnp.dot(h, whh_t_ref[...], preferred_element_type=jnp.float32)  # (TB, 3Hp)

    # Gate math in f32 (v5e has no bf16 VPU/EUP). Slices are lane-aligned
    # because each gate block is padded to Hp (multiple of 128).
    rz = jax.nn.sigmoid(gi[:, :2 * Hp] + gh[:, :2 * Hp]
                        + brz_ref[...].astype(jnp.float32))
    r = rz[:, :Hp]                       # reset gate
    z = rz[:, Hp:]                       # update gate
    n = jnp.tanh(gi[:, 2 * Hp:] + bin_ref[...].astype(jnp.float32)
                 + r * (gh[:, 2 * Hp:] + bhn_ref[...].astype(jnp.float32)))
    hy = n + z * (h.astype(jnp.float32) - n)   # == (1 - z) * n + z * h

    out_ref[...] = hy.astype(out_ref.dtype)


def gru_cell_with_hyp_bias(x, hx, params, *, batch_tile=256):
    """x: (B, I), hx: (B, H), params from prepare_gru_params. Returns (B, H)."""
    B, I = x.shape
    H, Ip, Hp = params["H"], params["Ip"], params["Hp"]
    dtype = x.dtype
    itemsize = jnp.dtype(dtype).itemsize

    # Sublane-aligned batch tile (8 for 32-bit, 16 for 16-bit dtypes).
    sub = 8 if itemsize == 4 else 16
    TB = min(batch_tile, _round_up(B, sub))
    Bp = _round_up(B, TB)

    # Lane/sublane pad activations (cheap, fused by XLA around the call).
    xp = jnp.zeros((Bp, Ip), dtype).at[:B, :I].set(x)
    hp = jnp.zeros((Bp, Hp), dtype).at[:B, :H].set(hx)

    grid = (Bp // TB,)

    # VMEM budget: weights (resident) + double-buffered activation/output tiles.
    w_bytes = (Ip * 3 * Hp + Hp * 3 * Hp + 4 * Hp) * jnp.dtype(params["wih_t"].dtype).itemsize
    act_bytes = 2 * (TB * Ip + 2 * TB * Hp) * itemsize
    vmem_bytes = min(max(2 * (w_bytes + act_bytes), 16 * 1024 * 1024), 64 * 1024 * 1024)

    cost = pl.CostEstimate(
        flops=int(2 * B * 3 * H * (I + H)),
        transcendentals=int(3 * B * H),
        bytes_accessed=int((B * I + B * H + 3 * H * (I + H) + 6 * H + B * H) * itemsize),
    )

    out = pl.pallas_call(
        _gru_cell_kernel,
        out_shape=jax.ShapeDtypeStruct((Bp, Hp), dtype),
        grid_spec=pltpu.PrefetchScalarGridSpec(
            num_scalar_prefetch=0,
            grid=grid,
            in_specs=[
                pl.BlockSpec((TB, Ip), lambda b: (b, 0)),        # x tile (streamed)
                pl.BlockSpec((TB, Hp), lambda b: (b, 0)),        # h tile (streamed)
                pl.BlockSpec((Ip, 3 * Hp), lambda b: (0, 0)),    # W_ih^T (resident)
                pl.BlockSpec((Hp, 3 * Hp), lambda b: (0, 0)),    # W_hh^T (resident)
                pl.BlockSpec((1, 2 * Hp), lambda b: (0, 0)),     # combined r/z bias
                pl.BlockSpec((1, Hp), lambda b: (0, 0)),         # b_in
                pl.BlockSpec((1, Hp), lambda b: (0, 0)),         # b_hn
            ],
            out_specs=pl.BlockSpec((TB, Hp), lambda b: (b, 0)),
        ),
        compiler_params=pltpu.CompilerParams(
            dimension_semantics=("parallel",),
            vmem_limit_bytes=int(vmem_bytes),
        ),
        cost_estimate=cost,
    )(xp, hp, params["wih_t"], params["whh_t"],
      params["b_rz"], params["b_in"], params["b_hn"])

    return out[:B, :H]


# ----------------------------------------------------------------------------
# Pure-JAX reference (for correctness check).
# ----------------------------------------------------------------------------
def gru_cell_ref(x, hx, weight_ih, weight_hh, bias_ih, bias_hh):
    gi = x @ weight_ih.T + bias_ih
    gh = hx @ weight_hh.T + bias_hh
    H = hx.shape[-1]
    i_r, i_z, i_n = gi[:, :H], gi[:, H:2 * H], gi[:, 2 * H:]
    h_r, h_z, h_n = gh[:, :H], gh[:, H:2 * H], gh[:, 2 * H:]
    r = jax.nn.sigmoid(i_r + h_r)
    z = jax.nn.sigmoid(i_z + h_z)
    n = jnp.tanh(i_n + r * h_n)
    return n + z * (hx - n)


if __name__ == "__main__":
    # Small deterministic config consistent with the module's forward.
    input_size = 16
    hidden_size = 32
    batch = 4
    num_chunks = 3
    c = 1.0                      # curvature
    dtype = jnp.float32

    stdv = 1.0 / math.sqrt(hidden_size)
    key = jax.random.PRNGKey(0)
    k_wih, k_whh, k_bi, k_bh, k_x, k_h = jax.random.split(key, 6)

    # Parameters (deterministic init, same distribution as reset_parameters()).
    weight_ih = jax.random.uniform(
        k_wih, (num_chunks * hidden_size, input_size), dtype, -stdv, stdv)
    weight_hh = jax.random.uniform(
        k_whh, (num_chunks * hidden_size, hidden_size), dtype, -stdv, stdv)
    raw_bias_ih = jax.random.uniform(
        k_bi, (num_chunks * hidden_size,), dtype, -stdv, stdv)
    raw_bias_hh = jax.random.uniform(
        k_bh, (num_chunks * hidden_size,), dtype, -stdv, stdv)

    # Hyperbolic bias construction (PoincareBall manifold, as in __init__).
    bias_ih = make_hyp_bias(raw_bias_ih, c)  # (1, 3H)
    bias_hh = make_hyp_bias(raw_bias_hh, c)  # (1, 3H)

    # ONE-TIME parameter packing (transpose + lane pad + bias fold).
    params = prepare_gru_params(weight_ih, weight_hh, bias_ih, bias_hh)
    params = jax.tree_util.tree_map(
        lambda a: jax.block_until_ready(a) if isinstance(a, jax.Array) else a, params)

    # Inputs: forward(input, hx) with hx defaulting to zeros when None.
    x = jax.random.normal(k_x, (batch, input_size), dtype)
    hx = jnp.zeros((batch, hidden_size), dtype)  # hx=None path

    out = jax.block_until_ready(gru_cell_with_hyp_bias(x, hx, params))
    ref = gru_cell_ref(x, hx, weight_ih, weight_hh, bias_ih, bias_hh)
    assert out.shape == (batch, hidden_size)
    assert jnp.allclose(out, ref, atol=1e-5, rtol=1e-5), "mismatch vs reference"

    # Also exercise a non-zero hx once.
    hx2 = jax.random.normal(k_h, (batch, hidden_size), dtype)
    out2 = jax.block_until_ready(gru_cell_with_hyp_bias(x, hx2, params))
    ref2 = gru_cell_ref(x, hx2, weight_ih, weight_hh, bias_ih, bias_hh)
    assert jnp.allclose(out2, ref2, atol=1e-5, rtol=1e-5), "mismatch vs reference (hx)"

    print("KERNEL_OK")
</pallas_src>

<mosaic_0001>
module attributes {stable_mosaic.version = 11 : i64} {
  func.func @_gru_cell_kernel(%arg0: i32, %arg1: memref<8x128xf32, #tpu.memory_space<vmem>>, %arg2: memref<8x128xf32, #tpu.memory_space<vmem>>, %arg3: memref<128x384xf32, #tpu.memory_space<vmem>>, %arg4: memref<128x384xf32, #tpu.memory_space<vmem>>, %arg5: memref<1x256xf32, #tpu.memory_space<vmem>>, %arg6: memref<1x128xf32, #tpu.memory_space<vmem>>, %arg7: memref<1x128xf32, #tpu.memory_space<vmem>>, %arg8: memref<8x128xf32, #tpu.memory_space<vmem>>) attributes {dimension_semantics = [#tpu.dimension_semantics<parallel>], iteration_bounds = array<i64: 1>, scalar_prefetch = 0 : i64, scratch_operands = 0 : i64, tpu.core_type = #tpu.core_type<tc>, window_params = [{transform_indices = @transform_0, window_bounds = array<i64: 8, 128>}, {transform_indices = @transform_1, window_bounds = array<i64: 8, 128>}, {pipeline_mode = #tpu.pipeline_mode<synchronous>, transform_indices = @transform_2, window_bounds = array<i64: 128, 384>}, {pipeline_mode = #tpu.pipeline_mode<synchronous>, transform_indices = @transform_3, window_bounds = array<i64: 128, 384>}, {pipeline_mode = #tpu.pipeline_mode<synchronous>, transform_indices = @transform_4, window_bounds = array<i64: 1, 256>}, {pipeline_mode = #tpu.pipeline_mode<synchronous>, transform_indices = @transform_5, window_bounds = array<i64: 1, 128>}, {pipeline_mode = #tpu.pipeline_mode<synchronous>, transform_indices = @transform_6, window_bounds = array<i64: 1, 128>}, {transform_indices = @transform_7, window_bounds = array<i64: 8, 128>}]} {
    %c0 = arith.constant 0 : index
    %c0_0 = arith.constant 0 : index
    %0 = vector.load %arg1[%c0, %c0_0] : memref<8x128xf32, #tpu.memory_space<vmem>>, vector<8x128xf32>
    %c0_1 = arith.constant 0 : index
    %c0_2 = arith.constant 0 : index
    %1 = vector.load %arg2[%c0_1, %c0_2] : memref<8x128xf32, #tpu.memory_space<vmem>>, vector<8x128xf32>
    %c0_3 = arith.constant 0 : index
    %c0_4 = arith.constant 0 : index
    %2 = vector.load %arg3[%c0_3, %c0_4] : memref<128x384xf32, #tpu.memory_space<vmem>>, vector<128x384xf32>
    %cst = arith.constant dense<0.000000e+00> : vector<8x384xf32>
    %3 = tpu.matmul %0, %2, %cst {dimension_numbers = #tpu.dot_dimension_numbers<[1], [0], [0], [1], [0, 0, 1, 1], [], []>} : vector<8x128xf32>, vector<128x384xf32>, vector<8x384xf32> -> vector<8x384xf32>
    %c0_5 = arith.constant 0 : index
    %c0_6 = arith.constant 0 : index
    %4 = vector.load %arg4[%c0_5, %c0_6] : memref<128x384xf32, #tpu.memory_space<vmem>>, vector<128x384xf32>
    %cst_7 = arith.constant dense<0.000000e+00> : vector<8x384xf32>
    %5 = tpu.matmul %1, %4, %cst_7 {dimension_numbers = #tpu.dot_dimension_numbers<[1], [0], [0], [1], [0, 0, 1, 1], [], []>} : vector<8x128xf32>, vector<128x384xf32>, vector<8x384xf32> -> vector<8x384xf32>
    %6 = vector.extract_strided_slice %3 {offsets = [0, 0], sizes = [8, 256], strides = [1, 1]} : vector<8x384xf32> to vector<8x256xf32>
    %7 = vector.extract_strided_slice %5 {offsets = [0, 0], sizes = [8, 256], strides = [1, 1]} : vector<8x384xf32> to vector<8x256xf32>
    %8 = arith.addf %6, %7 : vector<8x256xf32>
    %c0_8 = arith.constant 0 : index
    %c0_9 = arith.constant 0 : index
    %9 = vector.load %arg5[%c0_8, %c0_9] : memref<1x256xf32, #tpu.memory_space<vmem>>, vector<1x256xf32>
    %10 = vector.broadcast %9 : vector<1x256xf32> to vector<8x256xf32>
    %11 = arith.addf %8, %10 : vector<8x256xf32>
    %12 = arith.negf %11 : vector<8x256xf32>
    %13 = math.exp %12 : vector<8x256xf32>
    %cst_10 = arith.constant 1.000000e+00 : f32
    %14 = vector.broadcast %cst_10 : f32 to vector<8x256xf32>
    %15 = arith.addf %14, %13 : vector<8x256xf32>
    %16 = arith.divf %14, %15 : vector<8x256xf32>
    %17 = vector.extract_strided_slice %16 {offsets = [0, 0], sizes = [8, 128], strides = [1, 1]} : vector<8x256xf32> to vector<8x128xf32>
    %18 = vector.extract_strided_slice %16 {offsets = [0, 128], sizes = [8, 128], strides = [1, 1]} : vector<8x256xf32> to vector<8x128xf32>
    %19 = vector.extract_strided_slice %3 {offsets = [0, 256], sizes = [8, 128], strides = [1, 1]} : vector<8x384xf32> to vector<8x128xf32>
    %c0_11 = arith.constant 0 : index
    %c0_12 = arith.constant 0 : index
    %20 = vector.load %arg6[%c0_11, %c0_12] : memref<1x128xf32, #tpu.memory_space<vmem>>, vector<1x128xf32>
    %21 = vector.broadcast %20 : vector<1x128xf32> to vector<8x128xf32>
    %22 = arith.addf %19, %21 : vector<8x128xf32>
    %23 = vector.extract_strided_slice %5 {offsets = [0, 256], sizes = [8, 128], strides = [1, 1]} : vector<8x384xf32> to vector<8x128xf32>
    %c0_13 = arith.constant 0 : index
    %c0_14 = arith.constant 0 : index
    %24 = vector.load %arg7[%c0_13, %c0_14] : memref<1x128xf32, #tpu.memory_space<vmem>>, vector<1x128xf32>
    %25 = vector.broadcast %24 : vector<1x128xf32> to vector<8x128xf32>
    %26 = arith.addf %23, %25 : vector<8x128xf32>
    %27 = arith.mulf %17, %26 : vector<8x128xf32>
    %28 = arith.addf %22, %27 : vector<8x128xf32>
    %29 = math.tanh %28 : vector<8x128xf32>
    %30 = arith.subf %1, %29 : vector<8x128xf32>
    %31 = arith.mulf %18, %30 : vector<8x128xf32>
    %32 = arith.addf %29, %31 : vector<8x128xf32>
    %c0_15 = arith.constant 0 : index
    %c0_16 = arith.constant 0 : index
    %33 = vector.load %arg8[%c0_15, %c0_16] : memref<8x128xf32, #tpu.memory_space<vmem>>, vector<8x128xf32>
    tpu.vector_store %arg8[%c0_15, %c0_16], %32 {strides = array<i32>} : memref<8x128xf32, #tpu.memory_space<vmem>>, vector<8x128xf32>,
    return
  }
  func.func @transform_0(%arg0: i32) -> (i32, i32) {
    %c0_i32 = arith.constant 0 : i32
    %c0_i32_0 = arith.constant 0 : i32
    return %arg0, %c0_i32 : i32, i32
  }
  func.func @transform_1(%arg0: i32) -> (i32, i32) {
    %c0_i32 = arith.constant 0 : i32
    %c0_i32_0 = arith.constant 0 : i32
    return %arg0, %c0_i32 : i32, i32
  }
  func.func @transform_2(%arg0: i32) -> (i32, i32) {
    %c0_i32 = arith.constant 0 : i32
    %c0_i32_0 = arith.constant 0 : i32
    %c0_i32_1 = arith.constant 0 : i32
    return %c0_i32, %c0_i32_0 : i32, i32
  }
  func.func @transform_3(%arg0: i32) -> (i32, i32) {
    %c0_i32 = arith.constant 0 : i32
    %c0_i32_0 = arith.constant 0 : i32
    %c0_i32_1 = arith.constant 0 : i32
    return %c0_i32, %c0_i32_0 : i32, i32
  }
  func.func @transform_4(%arg0: i32) -> (i32, i32) {
    %c0_i32 = arith.constant 0 : i32
    %c0_i32_0 = arith.constant 0 : i32
    %c0_i32_1 = arith.constant 0 : i32
    return %c0_i32, %c0_i32_0 : i32, i32
  }
  func.func @transform_5(%arg0: i32) -> (i32, i32) {
    %c0_i32 = arith.constant 0 : i32
    %c0_i32_0 = arith.constant 0 : i32
    %c0_i32_1 = arith.constant 0 : i32
    return %c0_i32, %c0_i32_0 : i32, i32
  }
  func.func @transform_6(%arg0: i32) -> (i32, i32) {
    %c0_i32 = arith.constant 0 : i32
    %c0_i32_0 = arith.constant 0 : i32
    %c0_i32_1 = arith.constant 0 : i32
    return %c0_i32, %c0_i32_0 : i32, i32
  }
  func.func @transform_7(%arg0: i32) -> (i32, i32) {
    %c0_i32 = arith.constant 0 : i32
    %c0_i32_0 = arith.constant 0 : i32
    return %arg0, %c0_i32 : i32, i32
  }
}

</mosaic_0001>

<llo_original>
// kernel: tpu_custom_call.1
$region0: #{tpu_custom_call.1}
  #allocation0 [shape = 'u32[]', space=smem, size = 0x4, offset = 0x4, fixed_abs, tag = 'smem constant byte address 0x4 - core index']
  #allocation1 [shape = 'u32[144,128]{1,0:T(1,128)}', space=vmem, size = 0x12000, scoped, tag = 'internal scratch']
  %s0 = inlined_call_operand.hbm [shape: f32[8,128], index: 0, kind: input, shape index: {}]
  %s1 = inlined_call_operand.hbm [shape: f32[8,128], index: 1, kind: input, shape index: {}]
  %s2 = inlined_call_operand.hbm [shape: f32[128,384], index: 2, kind: input, shape index: {}]
  %s3 = inlined_call_operand.hbm [shape: f32[128,384], index: 3, kind: input, shape index: {}]
  %s4 = inlined_call_operand.vmem [shape: f32[1,256], index: 4, kind: input, shape index: {}]
  %s5 = inlined_call_operand.vmem [shape: f32[1,128], index: 5, kind: input, shape index: {}]
  %s6 = inlined_call_operand.vmem [shape: f32[1,128], index: 6, kind: input, shape index: {}]
  %s7 = inlined_call_operand.hbm [shape: f32[8,128], index: 7, kind: output, shape index: {}]
  %s8 = sld [smem:[#allocation0]]
  $region54: #{tpu_custom_call.1} parent=0
    _
  %s10 = ssub.s32 1, %s8
  %s11 = scalar_select 0, %s10, %s8
  $region1: #{tpu_custom_call.1} parent=0
    #allocation2 [shape = 'u8[4096]{0}', space=vmem, size = 0x1000, scoped, tag = 'input window, operand 0, single buffered']
    #allocation3 [shape = 's32[1]{0}', space=sflag, size = 0x4, scoped, tag = 'scoped memory for tpu_custom_call.1']
    #allocation4 [shape = 's32[1]{0}', space=sflag, size = 0x4, scoped, tag = 'scoped memory for tpu_custom_call.1']
    #allocation5 [shape = 'u8[4096]{0}', space=vmem, size = 0x1000, scoped, tag = 'input window, operand 1, single buffered']
    #allocation6 [shape = 's32[1]{0}', space=sflag, size = 0x4, scoped, tag = 'scoped memory for tpu_custom_call.1']
    #allocation7 [shape = 'u8[196608]{0}', space=vmem, size = 0x30000, scoped, tag = 'input window, operand 2, single buffered']
    #allocation8 [shape = 'u8[196608]{0}', space=vmem, size = 0x30000, scoped, tag = 'input window, operand 3, single buffered']
    #allocation9 [shape = 's32[1]{0}', space=sflag, size = 0x4, scoped, tag = 'scoped memory for tpu_custom_call.1']
    #allocation10 [shape = 'u8[4096]{0}', space=vmem, size = 0x1000, scoped, tag = 'output window, operand 0, single buffered']
    %12 = vsyncpa [#allocation3], 0
    %13 = vsyncpa [#allocation6], 0
    %14 = vsyncpa [#allocation9], 0
    %15 = vsyncpa [#allocation4], 0
    // Predicated region
    $region2: #{tpu_custom_call.1} parent=1 // pred_check
      _
    $region3: #{tpu_custom_call.1} parent=1 // pred_check_branch
      %17 = sbr.rel (0) target = $region5
    $region4: #{tpu_custom_call.1} parent=1 // pred_region
      %s19 = ssub.s32 128, 128
      %20 = vsyncadd [#allocation3], %s19
      %s22 = sshll.u32 [#allocation2], 4
      %s23 = int_to_ptr.vmem [resolvable:$true] %s22
      %25 = dma.hbm_to_vmem [thread:$0]  %s0, 128, %s23, [#allocation3]
    $region5: #{tpu_custom_call.1} parent=1 // pred_fallthru
      _
    // Predicated region
    $region6: #{tpu_custom_call.1} parent=1 // pred_check
      _
    $region7: #{tpu_custom_call.1} parent=1 // pred_check_branch
      %27 = sbr.rel (0) target = $region9
    $region8: #{tpu_custom_call.1} parent=1 // pred_region
      %s29 = ssub.s32 128, 128
      %30 = vsyncadd [#allocation6], %s29
      %s32 = sshll.u32 [#allocation5], 4
      %s33 = int_to_ptr.vmem [resolvable:$true] %s32
      %35 = dma.hbm_to_vmem [thread:$0]  %s1, 128, %s33, [#allocation6]
    $region9: #{tpu_custom_call.1} parent=1 // pred_fallthru
      _
    // Predicated region
    $region10: #{tpu_custom_call.1} parent=1 // pred_check
      _
    $region11: #{tpu_custom_call.1} parent=1 // pred_check_branch
      %37 = sbr.rel (0) target = $region13
    $region12: #{tpu_custom_call.1} parent=1 // pred_region
      %s39 = ssub.s32 6144, 6144
      %40 = vsyncadd [#allocation6], %s39
      %s41 = sshll.u32 [#allocation7], 4
      %s42 = int_to_ptr.vmem [resolvable:$true] %s41
      %47 = dma.hbm_to_vmem [thread:$0]  %s2, 6144, %s42, [#allocation6], 384, 384, 24
    $region13: #{tpu_custom_call.1} parent=1 // pred_fallthru
      _
    // Predicated region
    $region14: #{tpu_custom_call.1} parent=1 // pred_check
      _
    $region15: #{tpu_custom_call.1} parent=1 // pred_check_branch
      %49 = sbr.rel (0) target = $region17
    $region16: #{tpu_custom_call.1} parent=1 // pred_region
      %s51 = ssub.s32 6144, 6144
      %52 = vsyncadd [#allocation9], %s51
      %s53 = sshll.u32 [#allocation8], 4
      %s54 = int_to_ptr.vmem [resolvable:$true] %s53
      %59 = dma.hbm_to_vmem [thread:$0]  %s3, 6144, %s54, [#allocation9], 384, 384, 24
    $region17: #{tpu_custom_call.1} parent=1 // pred_fallthru
      _
    // Predicated region
    $region18: #{tpu_custom_call.1} parent=1 // pred_check
      _
    $region19: #{tpu_custom_call.1} parent=1 // pred_check_branch
      %61 = sbr.rel (0) target = $region21
    $region20: #{tpu_custom_call.1} parent=1 // pred_region
      _
    $region21: #{tpu_custom_call.1} parent=1 // pred_fallthru
      _
    // Predicated region
    $region22: #{tpu_custom_call.1} parent=1 // pred_check
      _
    $region23: #{tpu_custom_call.1} parent=1 // pred_check_branch
      %63 = sbr.rel (0) target = $region25
    $region24: #{tpu_custom_call.1} parent=1 // pred_region
      _
    $region25: #{tpu_custom_call.1} parent=1 // pred_fallthru
      _
    // Predicated region
    $region26: #{tpu_custom_call.1} parent=1 // pred_check
      _
    $region27: #{tpu_custom_call.1} parent=1 // pred_check_branch
      %65 = sbr.rel (0) target = $region29
    $region28: #{tpu_custom_call.1} parent=1 // pred_region
      _
    $region29: #{tpu_custom_call.1} parent=1 // pred_fallthru
      _
    // Predicated region
    $region30: #{tpu_custom_call.1} parent=1 // pred_check
      _
    $region31: #{tpu_custom_call.1} parent=1 // pred_check_branch
      %67 = sbr.rel (0) target = $region33
    $region32: #{tpu_custom_call.1} parent=1 // pred_region
      %68 = dma.done [#allocation3], 128
    $region33: #{tpu_custom_call.1} parent=1 // pred_fallthru
      _
    // Predicated region
    $region34: #{tpu_custom_call.1} parent=1 // pred_check
      _
    $region35: #{tpu_custom_call.1} parent=1 // pred_check_branch
      %70 = sbr.rel (0) target = $region37
    $region36: #{tpu_custom_call.1} parent=1 // pred_region
      %71 = dma.done [#allocation6], 128
    $region37: #{tpu_custom_call.1} parent=1 // pred_fallthru
      _
    // Predicated region
    $region38: #{tpu_custom_call.1} parent=1 // pred_check
      _
    $region39: #{tpu_custom_call.1} parent=1 // pred_check_branch
      %73 = sbr.rel (0) target = $region41
    $region40: #{tpu_custom_call.1} parent=1 // pred_region
      %74 = dma.done [#allocation6], 6144
    $region41: #{tpu_custom_call.1} parent=1 // pred_fallthru
      _
    // Predicated region
    $region42: #{tpu_custom_call.1} parent=1 // pred_check
      _
    $region43: #{tpu_custom_call.1} parent=1 // pred_check_branch
      %76 = sbr.rel (0) target = $region45
    $region44: #{tpu_custom_call.1} parent=1 // pred_region
      %77 = dma.done [#allocation9], 6144
    $region45: #{tpu_custom_call.1} parent=1 // pred_fallthru
      _
    %v78 = vld [vmem:[#allocation2] sm:$0xff]
    %v79 = vld [vmem:[#allocation5] sm:$0xff]
    %v80 = vld [vmem:[#allocation7] sm:$0xff]
    %v81 = vld [vmem:[#allocation7 + $0x8] sm:$0xff]
    %v82 = vld [vmem:[#allocation7 + $0x10] sm:$0xff]
    %v83 = vld [vmem:[#allocation7 + $0x18] sm:$0xff]
    %v84 = vld [vmem:[#allocation7 + $0x20] sm:$0xff]
    %v85 = vld [vmem:[#allocation7 + $0x28] sm:$0xff]
    %v86 = vld [vmem:[#allocation7 + $0x30] sm:$0xff]
    %v87 = vld [vmem:[#allocation7 + $0x38] sm:$0xff]
    %v88 = vld [vmem:[#allocation7 + $0x40] sm:$0xff]
    %v89 = vld [vmem:[#allocation7 + $0x48] sm:$0xff]
    %v90 = vld [vmem:[#allocation7 + $0x50] sm:$0xff]
    %v91 = vld [vmem:[#allocation7 + $0x58] sm:$0xff]
    %v92 = vld [vmem:[#allocation7 + $0x60] sm:$0xff]
    %v93 = vld [vmem:[#allocation7 + $0x68] sm:$0xff]
    %v94 = vld [vmem:[#allocation7 + $0x70] sm:$0xff]
    %v95 = vld [vmem:[#allocation7 + $0x78] sm:$0xff]
    %v96 = vld [vmem:[#allocation7 + $0x80] sm:$0xff]
    %v97 = vld [vmem:[#allocation7 + $0x88] sm:$0xff]
    %v98 = vld [vmem:[#allocation7 + $0x90] sm:$0xff]
    %v99 = vld [vmem:[#allocation7 + $0x98] sm:$0xff]
    %v100 = vld [vmem:[#allocation7 + $0xa0] sm:$0xff]
    %v101 = vld [vmem:[#allocation7 + $0xa8] sm:$0xff]
    %v102 = vld [vmem:[#allocation7 + $0xb0] sm:$0xff]
    %v103 = vld [vmem:[#allocation7 + $0xb8] sm:$0xff]
    %v104 = vld [vmem:[#allocation7 + $0xc0] sm:$0xff]
    %v105 = vld [vmem:[#allocation7 + $0xc8] sm:$0xff]
    %v106 = vld [vmem:[#allocation7 + $0xd0] sm:$0xff]
    %v107 = vld [vmem:[#allocation7 + $0xd8] sm:$0xff]
    %v108 = vld [vmem:[#allocation7 + $0xe0] sm:$0xff]
    %v109 = vld [vmem:[#allocation7 + $0xe8] sm:$0xff]
    %v110 = vld [vmem:[#allocation7 + $0xf0] sm:$0xff]
    %v111 = vld [vmem:[#allocation7 + $0xf8] sm:$0xff]
    %v112 = vld [vmem:[#allocation7 + $0x100] sm:$0xff]
    %v113 = vld [vmem:[#allocation7 + $0x108] sm:$0xff]
    %v114 = vld [vmem:[#allocation7 + $0x110] sm:$0xff]
    %v115 = vld [vmem:[#allocation7 + $0x118] sm:$0xff]
    %v116 = vld [vmem:[#allocation7 + $0x120] sm:$0xff]
    %v117 = vld [vmem:[#allocation7 + $0x128] sm:$0xff]
    %v118 = vld [vmem:[#allocation7 + $0x130] sm:$0xff]
    %v119 = vld [vmem:[#allocation7 + $0x138] sm:$0xff]
    %v120 = vld [vmem:[#allocation7 + $0x140] sm:$0xff]
    %v121 = vld [vmem:[#allocation7 + $0x148] sm:$0xff]
    %v122 = vld [vmem:[#allocation7 + $0x150] sm:$0xff]
    %v123 = vld [vmem:[#allocation7 + $0x158] sm:$0xff]
    %v124 = vld [vmem:[#allocation7 + $0x160] sm:$0xff]
    %v125 = vld [vmem:[#allocation7 + $0x168] sm:$0xff]
    %v126 = vld [vmem:[#allocation7 + $0x170] sm:$0xff]
    %v127 = vld [vmem:[#allocation7 + $0x178] sm:$0xff]
    %128 = vmatprep.subr.mxu0 %v126
    %129 = vmatpush1.msra.mxu0 %v125
    %130 = vmatprep.subr.mxu0 %v123
    %131 = vmatpush1.msra.mxu0 %v122
    %132 = vmatprep.subr.mxu0 %v120
    %133 = vmatpush1.msra.mxu0 %v119
    %134 = vmatprep.subr.mxu0 %v117
    %135 = vmatpush1.msra.mxu0 %v116
    %136 = vmatprep.subr.mxu0 %v114
    %137 = vmatpush1.msra.mxu0 %v113
    %138 = vmatprep.subr.mxu0 %v111
    %139 = vmatpush1.msra.mxu0 %v110
    %140 = vmatprep.subr.mxu0 %v108
    %141 = vmatpush1.msra.mxu0 %v107
    %142 = vmatprep.subr.mxu0 %v105
    %143 = vmatpush1.msra.mxu0 %v104
    %144 = vmatprep.subr.mxu0 %v102
    %145 = vmatpush1.msra.mxu0 %v101
    %146 = vmatprep.subr.mxu0 %v99
    %147 = vmatpush1.msra.mxu0 %v98
    %148 = vmatprep.subr.mxu0 %v96
    %149 = vmatpush1.msra.mxu0 %v95
    %150 = vmatprep.subr.mxu0 %v93
    %151 = vmatpush1.msra.mxu0 %v92
    %152 = vmatprep.subr.mxu0 %v90
    %153 = vmatpush1.msra.mxu0 %v89
    %154 = vmatprep.subr.mxu0 %v87
    %155 = vmatpush1.msra.mxu0 %v86
    %156 = vmatprep.subr.mxu0 %v84
    %157 = vmatpush1.msra.mxu0 %v83
    %158 = vmatprep.subr.mxu0 %v81
    %159 = vmatpush1.msra.mxu0 %v80
    %160 = vmatprep.subr.mxu0 0.0
    %161 = vmatpush2.msra.mxu0 0.0
    %162 = vmatprep.subr.mxu0 0.0
    %163 = vmatpush2.msra.mxu0 0.0
    %164 = vmatprep.subr.mxu0 0.0
    %165 = vmatpush2.msra.mxu0 0.0
    %166 = vmatprep.subr.mxu0 0.0
    %167 = vmatpush2.msra.mxu0 0.0
    %168 = vmatprep.subr.mxu0 0.0
    %169 = vmatpush2.msra.mxu0 0.0
    %170 = vmatprep.subr.mxu0 0.0
    %171 = vmatpush2.msra.mxu0 0.0
    %172 = vmatprep.subr.mxu0 0.0
    %173 = vmatpush2.msra.mxu0 0.0
    %174 = vmatprep.subr.mxu0 0.0
    %175 = vmatpush2.msra.mxu0 0.0
    %176 = vmatprep.subr.mxu0 0.0
    %177 = vmatpush2.msra.mxu0 0.0
    %178 = vmatprep.subr.mxu0 0.0
    %179 = vmatpush2.msra.mxu0 0.0
    %180 = vmatprep.subr.mxu0 0.0
    %181 = vmatpush2.msra.mxu0 0.0
    %182 = vmatprep.subr.mxu0 0.0
    %183 = vmatpush2.msra.mxu0 0.0
    %184 = vmatprep.subr.mxu0 0.0
    %185 = vmatpush2.msra.mxu0 0.0
    %186 = vmatprep.subr.mxu0 0.0
    %187 = vmatpush2.msra.mxu0 0.0
    %188 = vmatprep.subr.mxu0 0.0
    %189 = vmatpush2.msra.mxu0 0.0
    %190 = vmatprep.subr.mxu0 0.0
    %191 = vmatpush2.msra.mxu0 0.0
    %192 = vmatprep.mubr.f32.mxu0 0.0
    %193 = vmatmul.mubr.f32.gmra.mxu0 %v78
    %v194 = vpop.f32.mrf.mxu0
    %v195 = vadd.f32 0.0, %v194
    %v196 = vpop.f32.mrf.mxu0
    %v197 = vadd.f32 0.0, %v196
    %198 = vdwg.mxu0
    %199 = vmatprep.subr.mxu0 0.0
    %200 = vmatpush1.msra.mxu0 %v127
    %201 = vmatprep.subr.mxu0 0.0
    %202 = vmatpush1.msra.mxu0 %v124
    %203 = vmatprep.subr.mxu0 0.0
    %204 = vmatpush1.msra.mxu0 %v121
    %205 = vmatprep.subr.mxu0 0.0
    %206 = vmatpush1.msra.mxu0 %v118
    %207 = vmatprep.subr.mxu0 0.0
    %208 = vmatpush1.msra.mxu0 %v115
    %209 = vmatprep.subr.mxu0 0.0
    %210 = vmatpush1.msra.mxu0 %v112
    %211 = vmatprep.subr.mxu0 0.0
    %212 = vmatpush1.msra.mxu0 %v109
    %213 = vmatprep.subr.mxu0 0.0
    %214 = vmatpush1.msra.mxu0 %v106
    %215 = vmatprep.subr.mxu0 0.0
    %216 = vmatpush1.msra.mxu0 %v103
    %217 = vmatprep.subr.mxu0 0.0
    %218 = vmatpush1.msra.mxu0 %v100
    %219 = vmatprep.subr.mxu0 0.0
    %220 = vmatpush1.msra.mxu0 %v97
    %221 = vmatprep.subr.mxu0 0.0
    %222 = vmatpush1.msra.mxu0 %v94
    %223 = vmatprep.subr.mxu0 0.0
    %224 = vmatpush1.msra.mxu0 %v91
    %225 = vmatprep.subr.mxu0 0.0
    %226 = vmatpush1.msra.mxu0 %v88
    %227 = vmatprep.subr.mxu0 0.0
    %228 = vmatpush1.msra.mxu0 %v85
    %229 = vmatprep.subr.mxu0 0.0
    %230 = vmatpush1.msra.mxu0 %v82
    %231 = vmatprep.subr.mxu0 0.0
    %232 = vmatpush2.msra.mxu0 0.0
    %233 = vmatprep.subr.mxu0 0.0
    %234 = vmatpush2.msra.mxu0 0.0
    %235 = vmatprep.subr.mxu0 0.0
    %236 = vmatpush2.msra.mxu0 0.0
    %237 = vmatprep.subr.mxu0 0.0
    %238 = vmatpush2.msra.mxu0 0.0
    %239 = vmatprep.subr.mxu0 0.0
    %240 = vmatpush2.msra.mxu0 0.0
    %241 = vmatprep.subr.mxu0 0.0
    %242 = vmatpush2.msra.mxu0 0.0
    %243 = vmatprep.subr.mxu0 0.0
    %244 = vmatpush2.msra.mxu0 0.0
    %245 = vmatprep.subr.mxu0 0.0
    %246 = vmatpush2.msra.mxu0 0.0
    %247 = vmatprep.subr.mxu0 0.0
    %248 = vmatpush2.msra.mxu0 0.0
    %249 = vmatprep.subr.mxu0 0.0
    %250 = vmatpush2.msra.mxu0 0.0
    %251 = vmatprep.subr.mxu0 0.0
    %252 = vmatpush2.msra.mxu0 0.0
    %253 = vmatprep.subr.mxu0 0.0
    %254 = vmatpush2.msra.mxu0 0.0
    %255 = vmatprep.subr.mxu0 0.0
    %256 = vmatpush2.msra.mxu0 0.0
    %257 = vmatprep.subr.mxu0 0.0
    %258 = vmatpush2.msra.mxu0 0.0
    %259 = vmatprep.subr.mxu0 0.0
    %260 = vmatpush2.msra.mxu0 0.0
    %261 = vmatprep.subr.mxu0 0.0
    %262 = vmatpush2.msra.mxu0 0.0
    %263 = vmatprep.mubr.f32.mxu0 0.0
    %264 = vmatmul.mubr.f32.gmra.mxu0 %v78
    %v265 = vpop.f32.mrf.mxu0
    %v266 = vadd.f32 0.0, %v265
    %v267 = vpop.f32.mrf.mxu0
    %268 = vdwg.mxu0
    %v269 = vld [vmem:[#allocation8] sm:$0xff]
    %v270 = vld [vmem:[#allocation8 + $0x8] sm:$0xff]
    %v271 = vld [vmem:[#allocation8 + $0x10] sm:$0xff]
    %v272 = vld [vmem:[#allocation8 + $0x18] sm:$0xff]
    %v273 = vld [vmem:[#allocation8 + $0x20] sm:$0xff]
    %v274 = vld [vmem:[#allocation8 + $0x28] sm:$0xff]
    %v275 = vld [vmem:[#allocation8 + $0x30] sm:$0xff]
    %v276 = vld [vmem:[#allocation8 + $0x38] sm:$0xff]
    %v277 = vld [vmem:[#allocation8 + $0x40] sm:$0xff]
    %v278 = vld [vmem:[#allocation8 + $0x48] sm:$0xff]
    %v279 = vld [vmem:[#allocation8 + $0x50] sm:$0xff]
    %v280 = vld [vmem:[#allocation8 + $0x58] sm:$0xff]
    %v281 = vld [vmem:[#allocation8 + $0x60] sm:$0xff]
    %v282 = vld [vmem:[#allocation8 + $0x68] sm:$0xff]
    %v283 = vld [vmem:[#allocation8 + $0x70] sm:$0xff]
    %v284 = vld [vmem:[#allocation8 + $0x78] sm:$0xff]
    %v285 = vld [vmem:[#allocation8 + $0x80] sm:$0xff]
    %v286 = vld [vmem:[#allocation8 + $0x88] sm:$0xff]
    %v287 = vld [vmem:[#allocation8 + $0x90] sm:$0xff]
    %v288 = vld [vmem:[#allocation8 + $0x98] sm:$0xff]
    %v289 = vld [vmem:[#allocation8 + $0xa0] sm:$0xff]
    %v290 = vld [vmem:[#allocation8 + $0xa8] sm:$0xff]
    %v291 = vld [vmem:[#allocation8 + $0xb0] sm:$0xff]
    %v292 = vld [vmem:[#allocation8 + $0xb8] sm:$0xff]
    %v293 = vld [vmem:[#allocation8 + $0xc0] sm:$0xff]
    %v294 = vld [vmem:[#allocation8 + $0xc8] sm:$0xff]
    %v295 = vld [vmem:[#allocation8 + $0xd0] sm:$0xff]
    %v296 = vld [vmem:[#allocation8 + $0xd8] sm:$0xff]
    %v297 = vld [vmem:[#allocation8 + $0xe0] sm:$0xff]
    %v298 = vld [vmem:[#allocation8 + $0xe8] sm:$0xff]
    %v299 = vld [vmem:[#allocation8 + $0xf0] sm:$0xff]
    %v300 = vld [vmem:[#allocation8 + $0xf8] sm:$0xff]
    %v301 = vld [vmem:[#allocation8 + $0x100] sm:$0xff]
    %v302 = vld [vmem:[#allocation8 + $0x108] sm:$0xff]
    %v303 = vld [vmem:[#allocation8 + $0x110] sm:$0xff]
    %v304 = vld [vmem:[#allocation8 + $0x118] sm:$0xff]
    %v305 = vld [vmem:[#allocation8 + $0x120] sm:$0xff]
    %v306 = vld [vmem:[#allocation8 + $0x128] sm:$0xff]
    %v307 = vld [vmem:[#allocation8 + $0x130] sm:$0xff]
    %v308 = vld [vmem:[#allocation8 + $0x138] sm:$0xff]
    %v309 = vld [vmem:[#allocation8 + $0x140] sm:$0xff]
    %v310 = vld [vmem:[#allocation8 + $0x148] sm:$0xff]
    %v311 = vld [vmem:[#allocation8 + $0x150] sm:$0xff]
    %v312 = vld [vmem:[#allocation8 + $0x158] sm:$0xff]
    %v313 = vld [vmem:[#allocation8 + $0x160] sm:$0xff]
    %v314 = vld [vmem:[#allocation8 + $0x168] sm:$0xff]
    %v315 = vld [vmem:[#allocation8 + $0x170] sm:$0xff]
    %v316 = vld [vmem:[#allocation8 + $0x178] sm:$0xff]
    %317 = vmatprep.subr.mxu0 %v315
    %318 = vmatpush1.msra.mxu0 %v314
    %319 = vmatprep.subr.mxu0 %v312
    %320 = vmatpush1.msra.mxu0 %v311
    %321 = vmatprep.subr.mxu0 %v309
    %322 = vmatpush1.msra.mxu0 %v308
    %323 = vmatprep.subr.mxu0 %v306
    %324 = vmatpush1.msra.mxu0 %v305
    %325 = vmatprep.subr.mxu0 %v303
    %326 = vmatpush1.msra.mxu0 %v302
    %327 = vmatprep.subr.mxu0 %v300
    %328 = vmatpush1.msra.mxu0 %v299
    %329 = vmatprep.subr.mxu0 %v297
    %330 = vmatpush1.msra.mxu0 %v296
    %331 = vmatprep.subr.mxu0 %v294
    %332 = vmatpush1.msra.mxu0 %v293
    %333 = vmatprep.subr.mxu0 %v291
    %334 = vmatpush1.msra.mxu0 %v290
    %335 = vmatprep.subr.mxu0 %v288
    %336 = vmatpush1.msra.mxu0 %v287
    %337 = vmatprep.subr.mxu0 %v285
    %338 = vmatpush1.msra.mxu0 %v284
    %339 = vmatprep.subr.mxu0 %v282
    %340 = vmatpush1.msra.mxu0 %v281
    %341 = vmatprep.subr.mxu0 %v279
    %342 = vmatpush1.msra.mxu0 %v278
    %343 = vmatprep.subr.mxu0 %v276
    %344 = vmatpush1.msra.mxu0 %v275
    %345 = vmatprep.subr.mxu0 %v273
    %346 = vmatpush1.msra.mxu0 %v272
    %347 = vmatprep.subr.mxu0 %v270
    %348 = vmatpush1.msra.mxu0 %v269
    %349 = vmatprep.subr.mxu0 0.0
    %350 = vmatpush2.msra.mxu0 0.0
    %351 = vmatprep.subr.mxu0 0.0
    %352 = vmatpush2.msra.mxu0 0.0
    %353 = vmatprep.subr.mxu0 0.0
    %354 = vmatpush2.msra.mxu0 0.0
    %355 = vmatprep.subr.mxu0 0.0
    %356 = vmatpush2.msra.mxu0 0.0
    %357 = vmatprep.subr.mxu0 0.0
    %358 = vmatpush2.msra.mxu0 0.0
    %359 = vmatprep.subr.mxu0 0.0
    %360 = vmatpush2.msra.mxu0 0.0
    %361 = vmatprep.subr.mxu0 0.0
    %362 = vmatpush2.msra.mxu0 0.0
    %363 = vmatprep.subr.mxu0 0.0
    %364 = vmatpush2.msra.mxu0 0.0
    %365 = vmatprep.subr.mxu0 0.0
    %366 = vmatpush2.msra.mxu0 0.0
    %367 = vmatprep.subr.mxu0 0.0
    %368 = vmatpush2.msra.mxu0 0.0
    %369 = vmatprep.subr.mxu0 0.0
    %370 = vmatpush2.msra.mxu0 0.0
    %371 = vmatprep.subr.mxu0 0.0
    %372 = vmatpush2.msra.mxu0 0.0
    %373 = vmatprep.subr.mxu0 0.0
    %374 = vmatpush2.msra.mxu0 0.0
    %375 = vmatprep.subr.mxu0 0.0
    %376 = vmatpush2.msra.mxu0 0.0
    %377 = vmatprep.subr.mxu0 0.0
    %378 = vmatpush2.msra.mxu0 0.0
    %379 = vmatprep.subr.mxu0 0.0
    %380 = vmatpush2.msra.mxu0 0.0
    %381 = vmatprep.mubr.f32.mxu0 0.0
    %382 = vmatmul.mubr.f32.gmra.mxu0 %v79
    %v383 = vpop.f32.mrf.mxu0
    %v384 = vadd.f32 0.0, %v383
    %v385 = vpop.f32.mrf.mxu0
    %v386 = vadd.f32 0.0, %v385
    %387 = vdwg.mxu0
    %388 = vmatprep.subr.mxu0 0.0
    %389 = vmatpush1.msra.mxu0 %v316
    %390 = vmatprep.subr.mxu0 0.0
    %391 = vmatpush1.msra.mxu0 %v313
    %392 = vmatprep.subr.mxu0 0.0
    %393 = vmatpush1.msra.mxu0 %v310
    %394 = vmatprep.subr.mxu0 0.0
    %395 = vmatpush1.msra.mxu0 %v307
    %396 = vmatprep.subr.mxu0 0.0
    %397 = vmatpush1.msra.mxu0 %v304
    %398 = vmatprep.subr.mxu0 0.0
    %399 = vmatpush1.msra.mxu0 %v301
    %400 = vmatprep.subr.mxu0 0.0
    %401 = vmatpush1.msra.mxu0 %v298
    %402 = vmatprep.subr.mxu0 0.0
    %403 = vmatpush1.msra.mxu0 %v295
    %404 = vmatprep.subr.mxu0 0.0
    %405 = vmatpush1.msra.mxu0 %v292
    %406 = vmatprep.subr.mxu0 0.0
    %407 = vmatpush1.msra.mxu0 %v289
    %408 = vmatprep.subr.mxu0 0.0
    %409 = vmatpush1.msra.mxu0 %v286
    %410 = vmatprep.subr.mxu0 0.0
    %411 = vmatpush1.msra.mxu0 %v283
    %412 = vmatprep.subr.mxu0 0.0
    %413 = vmatpush1.msra.mxu0 %v280
    %414 = vmatprep.subr.mxu0 0.0
    %415 = vmatpush1.msra.mxu0 %v277
    %416 = vmatprep.subr.mxu0 0.0
    %417 = vmatpush1.msra.mxu0 %v274
    %418 = vmatprep.subr.mxu0 0.0
    %419 = vmatpush1.msra.mxu0 %v271
    %420 = vmatprep.subr.mxu0 0.0
    %421 = vmatpush2.msra.mxu0 0.0
    %422 = vmatprep.subr.mxu0 0.0
    %423 = vmatpush2.msra.mxu0 0.0
    %424 = vmatprep.subr.mxu0 0.0
    %425 = vmatpush2.msra.mxu0 0.0
    %426 = vmatprep.subr.mxu0 0.0
    %427 = vmatpush2.msra.mxu0 0.0
    %428 = vmatprep.subr.mxu0 0.0
    %429 = vmatpush2.msra.mxu0 0.0
    %430 = vmatprep.subr.mxu0 0.0
    %431 = vmatpush2.msra.mxu0 0.0
    %432 = vmatprep.subr.mxu0 0.0
    %433 = vmatpush2.msra.mxu0 0.0
    %434 = vmatprep.subr.mxu0 0.0
    %435 = vmatpush2.msra.mxu0 0.0
    %436 = vmatprep.subr.mxu0 0.0
    %437 = vmatpush2.msra.mxu0 0.0
    %438 = vmatprep.subr.mxu0 0.0
    %439 = vmatpush2.msra.mxu0 0.0
    %440 = vmatprep.subr.mxu0 0.0
    %441 = vmatpush2.msra.mxu0 0.0
    %442 = vmatprep.subr.mxu0 0.0
    %443 = vmatpush2.msra.mxu0 0.0
    %444 = vmatprep.subr.mxu0 0.0
    %445 = vmatpush2.msra.mxu0 0.0
    %446 = vmatprep.subr.mxu0 0.0
    %447 = vmatpush2.msra.mxu0 0.0
    %448 = vmatprep.subr.mxu0 0.0
    %449 = vmatpush2.msra.mxu0 0.0
    %450 = vmatprep.subr.mxu0 0.0
    %451 = vmatpush2.msra.mxu0 0.0
    %452 = vmatprep.mubr.f32.mxu0 0.0
    %453 = vmatmul.mubr.f32.gmra.mxu0 %v79
    %v454 = vpop.f32.mrf.mxu0
    %v455 = vadd.f32 0.0, %v454
    %v456 = vpop.f32.mrf.mxu0
    %457 = vdwg.mxu0
    %v458 = vadd.f32 %v195, %v384
    %v459 = vadd.f32 %v197, %v386
    %v460 = vld [vmem:[%s4] sm:$0x3]
    %v462 = vlaneseq
    %v463 = vshrl.u32 %v462, 7
    %v464 = vsub.s32 0, %v463
    %v465 = vrot.slane %v460, %v464
    %v466 = vlaneseq
    %v467 = vshrl.u32 %v466, 7
    %v468 = vsub.s32 1, %v467
    %v469 = vrot.slane %v460, %v468
    %v472 = vadd.f32 %v458, %v465
    %v473 = vadd.f32 %v459, %v469
    %v474 = vxor.u32 %v472, 2147483648
    %v475 = vxor.u32 %v473, 2147483648
    %v476 = vmul.f32 %v474, 1.442695
    %v477 = vpow.pop %v476
    %v478 = vmul.f32 %v475, 1.442695
    %v479 = vpow.pop %v478
    %v480 = vadd.f32 %v477, 1.0
    %v481 = vadd.f32 %v479, 1.0
    %v482 = vrcp.pop %v480
    %v483 = vmul.f32 1.0, %v482
    %v484 = vrcp.pop %v481
    %v485 = vmul.f32 1.0, %v484
    %v486 = vld [vmem:[%s5] sm:$0x1]
    %v488 = vlaneseq
    %v489 = vshrl.u32 %v488, 7
    %v490 = vsub.s32 0, %v489
    %v491 = vrot.slane %v486, %v490
    %v493 = vadd.f32 %v266, %v491
    %v494 = vld [vmem:[%s6] sm:$0x1]
    %v496 = vlaneseq
    %v497 = vshrl.u32 %v496, 7
    %v498 = vsub.s32 0, %v497
    %v499 = vrot.slane %v494, %v498
    %v501 = vadd.f32 %v455, %v499
    %v502 = vmul.f32 %v483, %v501
    %v503 = vadd.f32 %v493, %v502
    %v504 = vtanh.pop %v503
    %v505 = vsub.f32 %v79, %v504
    %v506 = vmul.f32 %v485, %v505
    %v507 = vadd.f32 %v504, %v506
    %508 = vst [vmem:[#allocation10] sm:$0xff] %v507
    // Predicated region
    $region46: #{tpu_custom_call.1} parent=1 // pred_check
      _
    $region47: #{tpu_custom_call.1} parent=1 // pred_check_branch
      %510 = sbr.rel (0) target = $region49
    $region48: #{tpu_custom_call.1} parent=1 // pred_region
      %s512 = ssub.s32 128, 128
      %513 = vsyncadd [#allocation4], %s512
      %s515 = sshll.u32 [#allocation10], 4
      %s516 = int_to_ptr.vmem [resolvable:$true] %s515
      %518 = dma.vmem_to_hbm [thread:$0]  %s516, 128, %s7, [#allocation4]
    $region49: #{tpu_custom_call.1} parent=1 // pred_fallthru
      _
    // Predicated region
    $region50: #{tpu_custom_call.1} parent=1 // pred_check
      _
    $region51: #{tpu_custom_call.1} parent=1 // pred_check_branch
      %520 = sbr.rel (0) target = $region53
    $region52: #{tpu_custom_call.1} parent=1 // pred_region
      %521 = dma.done [#allocation4], 128
    $region53: #{tpu_custom_call.1} parent=1 // pred_fallthru
      _
    %522 = vsyncpa [#allocation3], 1
    %523 = vsyncpa [#allocation6], 1
    %524 = vsyncpa [#allocation9], 1
    %525 = vsyncpa [#allocation4], 1

</llo_original>
